<compile_context>
chip_gen: v7x
topology: tpu7x:2x2x1
jax: 0.10.0
libtpu: 0.0.40
codegen_flags: <defaults>
</compile_context>

<pallas_src>
import jax
import jax.numpy as jnp
from jax.experimental import pallas as pl
from jax.experimental.pallas import tpu as pltpu

N_INPUT = 16
N_HIDDEN = 64
LN_EPS = 1e-5  # PyTorch LayerNorm default


def lstm_cell_kernel(x_ref, h_ref, c_ref, w_ref, b_ref, gamma_ref, beta_ref, hc_ref):
    """One fused LSTMCell step: gates matmul + LayerNorm + nonlinearities + state update."""
    H = N_HIDDEN

    # Fused gate projection: z = [h | x], single MXU dot with K = H + Din.
    z = jnp.concatenate([h_ref[...], x_ref[...]], axis=-1)            # (B, H+Din)
    gates = jnp.dot(z, w_ref[...], preferred_element_type=jnp.float32) + b_ref[...]

    # LayerNorm over the 4H gate dim; E[g^2] - mu^2 form -> independent reductions.
    mu = jnp.mean(gates, axis=-1, keepdims=True)
    ms = jnp.mean(gates * gates, axis=-1, keepdims=True)
    gates = (gates - mu) * jax.lax.rsqrt(ms - mu * mu + LN_EPS)
    gates = gates * gamma_ref[...] + beta_ref[...]

    # Chunk order per the module: f, i, c_hat, o.
    sig = jax.nn.sigmoid(gates)                                        # full (B, 4H) slab
    c_hat = jnp.tanh(gates[:, 2 * H:3 * H])                            # (B, H)
    f = sig[:, 0 * H:1 * H]
    i = sig[:, 1 * H:2 * H]
    o = sig[:, 3 * H:4 * H]

    c_new = f * c_ref[...] + i * c_hat
    h_new = o * jnp.tanh(c_new)

    # Lane-dense packed output [h' | c'] -> single unmasked (B, 128) store.
    hc_ref[...] = jnp.concatenate([h_new, c_new], axis=-1).astype(hc_ref.dtype)


def lstm_cell_forward(x, h, c, params):
    """x: (B, n_input), h/c: (B, n_hidden) -> (h_new, c_new), each (B, n_hidden)."""
    w, b, gamma, beta = params
    B = x.shape[0]
    H = N_HIDDEN

    grid_spec = pltpu.PrefetchScalarGridSpec(
        num_scalar_prefetch=0,
        grid=(1,),  # single invocation; everything fits in VMEM
        in_specs=[
            pl.BlockSpec((B, N_INPUT), lambda i: (0, 0)),              # x
            pl.BlockSpec((B, H), lambda i: (0, 0)),                    # h
            pl.BlockSpec((B, H), lambda i: (0, 0)),                    # c
            pl.BlockSpec((H + N_INPUT, 4 * H), lambda i: (0, 0)),      # gates W (in, out)
            pl.BlockSpec((1, 4 * H), lambda i: (0, 0)),                # gates b
            pl.BlockSpec((1, 4 * H), lambda i: (0, 0)),                # LN gamma
            pl.BlockSpec((1, 4 * H), lambda i: (0, 0)),                # LN beta
        ],
        out_specs=pl.BlockSpec((B, 2 * H), lambda i: (0, 0)),          # packed [h'|c']
    )
    hc = pl.pallas_call(
        lstm_cell_kernel,
        out_shape=jax.ShapeDtypeStruct((B, 2 * H), jnp.float32),
        grid_spec=grid_spec,
        compiler_params=pltpu.CompilerParams(dimension_semantics=("arbitrary",)),
    )(x, h, c, w, b, gamma, beta)
    return hc[:, :H], hc[:, H:]


def init_params(key):
    """Deterministic init; gate weight stored as (in, out) (transposed vs torch Linear)."""
    ks = jax.random.split(key, 4)
    fan_in = N_HIDDEN + N_INPUT
    bound = 1.0 / jnp.sqrt(fan_in)
    w = jax.random.uniform(ks[0], (fan_in, 4 * N_HIDDEN), jnp.float32, -bound, bound)
    b = jax.random.uniform(ks[1], (1, 4 * N_HIDDEN), jnp.float32, -bound, bound)
    # Perturb gamma/beta away from the (1, 0) torch defaults to exercise the LN affine path.
    gamma = 1.0 + 0.1 * jax.random.normal(ks[2], (1, 4 * N_HIDDEN), jnp.float32)
    beta = 0.1 * jax.random.normal(ks[3], (1, 4 * N_HIDDEN), jnp.float32)
    return (w, b, gamma, beta)


def lstm_cell_reference(x, h, c, params):
    """Pure-JAX replica of the PyTorch LSTMCell.forward (for a sanity check)."""
    w, b, gamma, beta = params
    z = jnp.concatenate([h, x], axis=1)
    gates = z @ w + b[0]
    mu = jnp.mean(gates, axis=-1, keepdims=True)
    var = jnp.mean((gates - mu) ** 2, axis=-1, keepdims=True)
    gates = (gates - mu) / jnp.sqrt(var + LN_EPS) * gamma[0] + beta[0]
    f, i, c_hat, o = jnp.split(gates, 4, axis=1)
    c_new = jax.nn.sigmoid(f) * c + jax.nn.sigmoid(i) * jnp.tanh(c_hat)
    h_new = jax.nn.sigmoid(o) * jnp.tanh(c_new)
    return h_new, c_new


if __name__ == "__main__":
    key = jax.random.PRNGKey(0)
    k_x, k_h, k_c, k_p = jax.random.split(key, 4)

    batch = 8
    x = jax.random.normal(k_x, (batch, N_INPUT), jnp.float32)
    h = jax.random.normal(k_h, (batch, N_HIDDEN), jnp.float32)
    c = jax.random.normal(k_c, (batch, N_HIDDEN), jnp.float32)
    params = init_params(k_p)

    h_out, c_out = lstm_cell_forward(x, h, c, params)
    h_out = jax.block_until_ready(h_out)
    c_out = jax.block_until_ready(c_out)

    h_ref, c_ref = lstm_cell_reference(x, h, c, params)

    assert h_out.shape == (batch, N_HIDDEN) and c_out.shape == (batch, N_HIDDEN)
    assert jnp.all(jnp.isfinite(h_out)) and jnp.all(jnp.isfinite(c_out))
    assert jnp.max(jnp.abs(h_out - h_ref)) < 1e-4, "h mismatch vs reference"
    assert jnp.max(jnp.abs(c_out - c_ref)) < 1e-4, "c mismatch vs reference"
    print("KERNEL_OK")
</pallas_src>

<mosaic_0001>
module attributes {stable_mosaic.version = 11 : i64} {
  func.func @lstm_cell_kernel(%arg0: i32, %arg1: memref<8x16xf32, #tpu.memory_space<vmem>>, %arg2: memref<8x64xf32, #tpu.memory_space<vmem>>, %arg3: memref<8x64xf32, #tpu.memory_space<vmem>>, %arg4: memref<80x256xf32, #tpu.memory_space<vmem>>, %arg5: memref<1x256xf32, #tpu.memory_space<vmem>>, %arg6: memref<1x256xf32, #tpu.memory_space<vmem>>, %arg7: memref<1x256xf32, #tpu.memory_space<vmem>>, %arg8: memref<8x128xf32, #tpu.memory_space<vmem>>) attributes {dimension_semantics = [#tpu.dimension_semantics<arbitrary>], iteration_bounds = array<i64: 1>, scalar_prefetch = 0 : i64, scratch_operands = 0 : i64, tpu.core_type = #tpu.core_type<tc>, window_params = [{pipeline_mode = #tpu.pipeline_mode<synchronous>, transform_indices = @transform_0, window_bounds = array<i64: 8, 16>}, {pipeline_mode = #tpu.pipeline_mode<synchronous>, transform_indices = @transform_1, window_bounds = array<i64: 8, 64>}, {pipeline_mode = #tpu.pipeline_mode<synchronous>, transform_indices = @transform_2, window_bounds = array<i64: 8, 64>}, {pipeline_mode = #tpu.pipeline_mode<synchronous>, transform_indices = @transform_3, window_bounds = array<i64: 80, 256>}, {pipeline_mode = #tpu.pipeline_mode<synchronous>, transform_indices = @transform_4, window_bounds = array<i64: 1, 256>}, {pipeline_mode = #tpu.pipeline_mode<synchronous>, transform_indices = @transform_5, window_bounds = array<i64: 1, 256>}, {pipeline_mode = #tpu.pipeline_mode<synchronous>, transform_indices = @transform_6, window_bounds = array<i64: 1, 256>}, {pipeline_mode = #tpu.pipeline_mode<synchronous>, transform_indices = @transform_7, window_bounds = array<i64: 8, 128>}]} {
    %c0 = arith.constant 0 : index
    %c0_0 = arith.constant 0 : index
    %0 = vector.load %arg2[%c0, %c0_0] : memref<8x64xf32, #tpu.memory_space<vmem>>, vector<8x64xf32>
    %c0_1 = arith.constant 0 : index
    %c0_2 = arith.constant 0 : index
    %1 = vector.load %arg1[%c0_1, %c0_2] : memref<8x16xf32, #tpu.memory_space<vmem>>, vector<8x16xf32>
    %2 = tpu.concatenate %0, %1 in 1 : vector<8x64xf32>, vector<8x16xf32> -> vector<8x80xf32>
    %c0_3 = arith.constant 0 : index
    %c0_4 = arith.constant 0 : index
    %3 = vector.load %arg4[%c0_3, %c0_4] : memref<80x256xf32, #tpu.memory_space<vmem>>, vector<80x256xf32>
    %cst = arith.constant dense<0.000000e+00> : vector<8x256xf32>
    %4 = tpu.matmul %2, %3, %cst {dimension_numbers = #tpu.dot_dimension_numbers<[1], [0], [0], [1], [0, 0, 1, 1], [], []>} : vector<8x80xf32>, vector<80x256xf32>, vector<8x256xf32> -> vector<8x256xf32>
    %c0_5 = arith.constant 0 : index
    %c0_6 = arith.constant 0 : index
    %5 = vector.load %arg5[%c0_5, %c0_6] : memref<1x256xf32, #tpu.memory_space<vmem>>, vector<1x256xf32>
    %6 = vector.broadcast %5 : vector<1x256xf32> to vector<8x256xf32>
    %7 = arith.addf %4, %6 : vector<8x256xf32>
    %cst_7 = arith.constant dense<0.000000e+00> : vector<8xf32>
    %8 = vector.multi_reduction <add>, %7, %cst_7 [1] : vector<8x256xf32> to vector<8xf32>
    %9 = vector.shape_cast %8 : vector<8xf32> to vector<8x1xf32>
    %cst_8 = arith.constant 2.560000e+02 : f32
    %10 = vector.broadcast %cst_8 : f32 to vector<8x1xf32>
    %11 = arith.divf %9, %10 : vector<8x1xf32>
    %12 = arith.mulf %7, %7 : vector<8x256xf32>
    %cst_9 = arith.constant dense<0.000000e+00> : vector<8xf32>
    %13 = vector.multi_reduction <add>, %12, %cst_9 [1] : vector<8x256xf32> to vector<8xf32>
    %14 = vector.shape_cast %13 : vector<8xf32> to vector<8x1xf32>
    %cst_10 = arith.constant 2.560000e+02 : f32
    %15 = vector.broadcast %cst_10 : f32 to vector<8x1xf32>
    %16 = arith.divf %14, %15 : vector<8x1xf32>
    %17 = vector.broadcast %11 : vector<8x1xf32> to vector<8x256xf32>
    %18 = arith.subf %7, %17 : vector<8x256xf32>
    %19 = arith.mulf %11, %11 : vector<8x1xf32>
    %20 = arith.subf %16, %19 : vector<8x1xf32>
    %cst_11 = arith.constant 9.99999974E-6 : f32
    %21 = vector.broadcast %cst_11 : f32 to vector<8x1xf32>
    %22 = arith.addf %20, %21 : vector<8x1xf32>
    %23 = math.rsqrt %22 : vector<8x1xf32>
    %24 = vector.broadcast %23 : vector<8x1xf32> to vector<8x256xf32>
    %25 = arith.mulf %18, %24 : vector<8x256xf32>
    %c0_12 = arith.constant 0 : index
    %c0_13 = arith.constant 0 : index
    %26 = vector.load %arg6[%c0_12, %c0_13] : memref<1x256xf32, #tpu.memory_space<vmem>>, vector<1x256xf32>
    %27 = vector.broadcast %26 : vector<1x256xf32> to vector<8x256xf32>
    %28 = arith.mulf %25, %27 : vector<8x256xf32>
    %c0_14 = arith.constant 0 : index
    %c0_15 = arith.constant 0 : index
    %29 = vector.load %arg7[%c0_14, %c0_15] : memref<1x256xf32, #tpu.memory_space<vmem>>, vector<1x256xf32>
    %30 = vector.broadcast %29 : vector<1x256xf32> to vector<8x256xf32>
    %31 = arith.addf %28, %30 : vector<8x256xf32>
    %32 = arith.negf %31 : vector<8x256xf32>
    %33 = math.exp %32 : vector<8x256xf32>
    %cst_16 = arith.constant 1.000000e+00 : f32
    %34 = vector.broadcast %cst_16 : f32 to vector<8x256xf32>
    %35 = arith.addf %34, %33 : vector<8x256xf32>
    %36 = arith.divf %34, %35 : vector<8x256xf32>
    %37 = vector.extract_strided_slice %31 {offsets = [0, 128], sizes = [8, 64], strides = [1, 1]} : vector<8x256xf32> to vector<8x64xf32>
    %38 = math.tanh %37 : vector<8x64xf32>
    %39 = vector.extract_strided_slice %36 {offsets = [0, 0], sizes = [8, 64], strides = [1, 1]} : vector<8x256xf32> to vector<8x64xf32>
    %40 = vector.extract_strided_slice %36 {offsets = [0, 64], sizes = [8, 64], strides = [1, 1]} : vector<8x256xf32> to vector<8x64xf32>
    %41 = vector.extract_strided_slice %36 {offsets = [0, 192], sizes = [8, 64], strides = [1, 1]} : vector<8x256xf32> to vector<8x64xf32>
    %c0_17 = arith.constant 0 : index
    %c0_18 = arith.constant 0 : index
    %42 = vector.load %arg3[%c0_17, %c0_18] : memref<8x64xf32, #tpu.memory_space<vmem>>, vector<8x64xf32>
    %43 = arith.mulf %39, %42 : vector<8x64xf32>
    %44 = arith.mulf %40, %38 : vector<8x64xf32>
    %45 = arith.addf %43, %44 : vector<8x64xf32>
    %46 = math.tanh %45 : vector<8x64xf32>
    %47 = arith.mulf %41, %46 : vector<8x64xf32>
    %48 = tpu.concatenate %47, %45 in 1 : vector<8x64xf32>, vector<8x64xf32> -> vector<8x128xf32>
    %c0_19 = arith.constant 0 : index
    %c0_20 = arith.constant 0 : index
    %49 = vector.load %arg8[%c0_19, %c0_20] : memref<8x128xf32, #tpu.memory_space<vmem>>, vector<8x128xf32>
    tpu.vector_store %arg8[%c0_19, %c0_20], %48 {strides = array<i32>} : memref<8x128xf32, #tpu.memory_space<vmem>>, vector<8x128xf32>,
    return
  }
  func.func @transform_0(%arg0: i32) -> (i32, i32) {
    %c0_i32 = arith.constant 0 : i32
    %c0_i32_0 = arith.constant 0 : i32
    %c0_i32_1 = arith.constant 0 : i32
    return %c0_i32, %c0_i32_0 : i32, i32
  }
  func.func @transform_1(%arg0: i32) -> (i32, i32) {
    %c0_i32 = arith.constant 0 : i32
    %c0_i32_0 = arith.constant 0 : i32
    %c0_i32_1 = arith.constant 0 : i32
    return %c0_i32, %c0_i32_0 : i32, i32
  }
  func.func @transform_2(%arg0: i32) -> (i32, i32) {
    %c0_i32 = arith.constant 0 : i32
    %c0_i32_0 = arith.constant 0 : i32
    %c0_i32_1 = arith.constant 0 : i32
    return %c0_i32, %c0_i32_0 : i32, i32
  }
  func.func @transform_3(%arg0: i32) -> (i32, i32) {
    %c0_i32 = arith.constant 0 : i32
    %c0_i32_0 = arith.constant 0 : i32
    %c0_i32_1 = arith.constant 0 : i32
    return %c0_i32, %c0_i32_0 : i32, i32
  }
  func.func @transform_4(%arg0: i32) -> (i32, i32) {
    %c0_i32 = arith.constant 0 : i32
    %c0_i32_0 = arith.constant 0 : i32
    %c0_i32_1 = arith.constant 0 : i32
    return %c0_i32, %c0_i32_0 : i32, i32
  }
  func.func @transform_5(%arg0: i32) -> (i32, i32) {
    %c0_i32 = arith.constant 0 : i32
    %c0_i32_0 = arith.constant 0 : i32
    %c0_i32_1 = arith.constant 0 : i32
    return %c0_i32, %c0_i32_0 : i32, i32
  }
  func.func @transform_6(%arg0: i32) -> (i32, i32) {
    %c0_i32 = arith.constant 0 : i32
    %c0_i32_0 = arith.constant 0 : i32
    %c0_i32_1 = arith.constant 0 : i32
    return %c0_i32, %c0_i32_0 : i32, i32
  }
  func.func @transform_7(%arg0: i32) -> (i32, i32) {
    %c0_i32 = arith.constant 0 : i32
    %c0_i32_0 = arith.constant 0 : i32
    %c0_i32_1 = arith.constant 0 : i32
    return %c0_i32, %c0_i32_0 : i32, i32
  }
}

</mosaic_0001>

<llo_original>
// kernel: tpu_custom_call.1
$region0: #{tpu_custom_call.1}
  #allocation0 [shape = 'u32[]', space=smem, size = 0x4, offset = 0x4, fixed_abs, tag = 'smem constant byte address 0x4 - core index']
  #allocation1 [shape = 'u32[144,128]{1,0:T(1,128)}', space=vmem, size = 0x12000, scoped, tag = 'internal scratch']
  %s0 = inlined_call_operand.hbm [shape: f32[8,16], index: 0, kind: input, shape index: {}]
  %s1 = inlined_call_operand.hbm [shape: f32[8,64], index: 1, kind: input, shape index: {}]
  %s2 = inlined_call_operand.hbm [shape: f32[8,64], index: 2, kind: input, shape index: {}]
  %s3 = inlined_call_operand.hbm [shape: f32[80,256], index: 3, kind: input, shape index: {}]
  %s4 = inlined_call_operand.vmem [shape: f32[1,256], index: 4, kind: input, shape index: {}]
  %s5 = inlined_call_operand.vmem [shape: f32[1,256], index: 5, kind: input, shape index: {}]
  %s6 = inlined_call_operand.vmem [shape: f32[1,256], index: 6, kind: input, shape index: {}]
  %s7 = inlined_call_operand.hbm [shape: f32[8,128], index: 7, kind: output, shape index: {}]
  %s8 = sld [smem:[#allocation0]]
  $region54: #{tpu_custom_call.1} parent=0
    _
  %s10 = ssub.s32 1, %s8
  %s11 = scalar_select 0, %s10, %s8
  $region1: #{tpu_custom_call.1} parent=0
    #allocation2 [shape = 'u8[4096]{0}', space=vmem, size = 0x1000, scoped, tag = 'input window, operand 0, single buffered']
    #allocation3 [shape = 's32[1]{0}', space=sflag, size = 0x4, scoped, tag = 'scoped memory for tpu_custom_call.1']
    #allocation4 [shape = 's32[1]{0}', space=sflag, size = 0x4, scoped, tag = 'scoped memory for tpu_custom_call.1']
    #allocation5 [shape = 'u8[4096]{0}', space=vmem, size = 0x1000, scoped, tag = 'input window, operand 1, single buffered']
    #allocation6 [shape = 's32[1]{0}', space=sflag, size = 0x4, scoped, tag = 'scoped memory for tpu_custom_call.1']
    #allocation7 [shape = 'u8[4096]{0}', space=vmem, size = 0x1000, scoped, tag = 'input window, operand 2, single buffered']
    #allocation8 [shape = 'u8[81920]{0}', space=vmem, size = 0x14000, scoped, tag = 'input window, operand 3, single buffered']
    #allocation9 [shape = 's32[1]{0}', space=sflag, size = 0x4, scoped, tag = 'scoped memory for tpu_custom_call.1']
    #allocation10 [shape = 'u8[4096]{0}', space=vmem, size = 0x1000, scoped, tag = 'output window, operand 0, single buffered']
    %12 = vsyncpa [#allocation3], 0
    %13 = vsyncpa [#allocation6], 0
    %14 = vsyncpa [#allocation9], 0
    %15 = vsyncpa [#allocation4], 0
    // Predicated region
    $region2: #{tpu_custom_call.1} parent=1 // pred_check
      _
    $region3: #{tpu_custom_call.1} parent=1 // pred_check_branch
      %17 = sbr.rel (0) target = $region5
    $region4: #{tpu_custom_call.1} parent=1 // pred_region
      %s19 = ssub.s32 128, 128
      %20 = vsyncadd [#allocation3], %s19
      %s22 = sshll.u32 [#allocation2], 4
      %s23 = int_to_ptr.vmem [resolvable:$true] %s22
      %25 = dma.hbm_to_vmem [thread:$0]  %s0, 128, %s23, [#allocation3]
    $region5: #{tpu_custom_call.1} parent=1 // pred_fallthru
      _
    // Predicated region
    $region6: #{tpu_custom_call.1} parent=1 // pred_check
      _
    $region7: #{tpu_custom_call.1} parent=1 // pred_check_branch
      %27 = sbr.rel (0) target = $region9
    $region8: #{tpu_custom_call.1} parent=1 // pred_region
      %s29 = ssub.s32 128, 128
      %30 = vsyncadd [#allocation6], %s29
      %s32 = sshll.u32 [#allocation5], 4
      %s33 = int_to_ptr.vmem [resolvable:$true] %s32
      %35 = dma.hbm_to_vmem [thread:$0]  %s1, 128, %s33, [#allocation6]
    $region9: #{tpu_custom_call.1} parent=1 // pred_fallthru
      _
    // Predicated region
    $region10: #{tpu_custom_call.1} parent=1 // pred_check
      _
    $region11: #{tpu_custom_call.1} parent=1 // pred_check_branch
      %37 = sbr.rel (0) target = $region13
    $region12: #{tpu_custom_call.1} parent=1 // pred_region
      %s39 = ssub.s32 128, 128
      %40 = vsyncadd [#allocation6], %s39
      %s42 = sshll.u32 [#allocation7], 4
      %s43 = int_to_ptr.vmem [resolvable:$true] %s42
      %45 = dma.hbm_to_vmem [thread:$0]  %s2, 128, %s43, [#allocation6]
    $region13: #{tpu_custom_call.1} parent=1 // pred_fallthru
      _
    // Predicated region
    $region14: #{tpu_custom_call.1} parent=1 // pred_check
      _
    $region15: #{tpu_custom_call.1} parent=1 // pred_check_branch
      %47 = sbr.rel (0) target = $region17
    $region16: #{tpu_custom_call.1} parent=1 // pred_region
      %s49 = ssub.s32 2560, 2560
      %50 = vsyncadd [#allocation9], %s49
      %s51 = sshll.u32 [#allocation8], 4
      %s52 = int_to_ptr.vmem [resolvable:$true] %s51
      %57 = dma.hbm_to_vmem [thread:$0]  %s3, 2560, %s52, [#allocation9], 256, 256, 16
    $region17: #{tpu_custom_call.1} parent=1 // pred_fallthru
      _
    // Predicated region
    $region18: #{tpu_custom_call.1} parent=1 // pred_check
      _
    $region19: #{tpu_custom_call.1} parent=1 // pred_check_branch
      %59 = sbr.rel (0) target = $region21
    $region20: #{tpu_custom_call.1} parent=1 // pred_region
      _
    $region21: #{tpu_custom_call.1} parent=1 // pred_fallthru
      _
    // Predicated region
    $region22: #{tpu_custom_call.1} parent=1 // pred_check
      _
    $region23: #{tpu_custom_call.1} parent=1 // pred_check_branch
      %61 = sbr.rel (0) target = $region25
    $region24: #{tpu_custom_call.1} parent=1 // pred_region
      _
    $region25: #{tpu_custom_call.1} parent=1 // pred_fallthru
      _
    // Predicated region
    $region26: #{tpu_custom_call.1} parent=1 // pred_check
      _
    $region27: #{tpu_custom_call.1} parent=1 // pred_check_branch
      %63 = sbr.rel (0) target = $region29
    $region28: #{tpu_custom_call.1} parent=1 // pred_region
      _
    $region29: #{tpu_custom_call.1} parent=1 // pred_fallthru
      _
    // Predicated region
    $region30: #{tpu_custom_call.1} parent=1 // pred_check
      _
    $region31: #{tpu_custom_call.1} parent=1 // pred_check_branch
      %65 = sbr.rel (0) target = $region33
    $region32: #{tpu_custom_call.1} parent=1 // pred_region
      %66 = dma.done [#allocation3], 128
    $region33: #{tpu_custom_call.1} parent=1 // pred_fallthru
      _
    // Predicated region
    $region34: #{tpu_custom_call.1} parent=1 // pred_check
      _
    $region35: #{tpu_custom_call.1} parent=1 // pred_check_branch
      %68 = sbr.rel (0) target = $region37
    $region36: #{tpu_custom_call.1} parent=1 // pred_region
      %69 = dma.done [#allocation6], 128
    $region37: #{tpu_custom_call.1} parent=1 // pred_fallthru
      _
    // Predicated region
    $region38: #{tpu_custom_call.1} parent=1 // pred_check
      _
    $region39: #{tpu_custom_call.1} parent=1 // pred_check_branch
      %71 = sbr.rel (0) target = $region41
    $region40: #{tpu_custom_call.1} parent=1 // pred_region
      %72 = dma.done [#allocation6], 128
    $region41: #{tpu_custom_call.1} parent=1 // pred_fallthru
      _
    // Predicated region
    $region42: #{tpu_custom_call.1} parent=1 // pred_check
      _
    $region43: #{tpu_custom_call.1} parent=1 // pred_check_branch
      %74 = sbr.rel (0) target = $region45
    $region44: #{tpu_custom_call.1} parent=1 // pred_region
      %75 = dma.done [#allocation9], 2560
    $region45: #{tpu_custom_call.1} parent=1 // pred_fallthru
      _
    %v76 = vld [vmem:[#allocation5] sm:$0xff]
    %v77 = vld [vmem:[#allocation2] sm:$0xff]
    %79 = vrot.lane.b32.xlu0 %v77, 64
    %v80 = vpop.permute.xlu0 %79
    %vm82 = vcmask 523264
    %v83 = vsel %vm82, %v76, %v80
    %v84 = vld [vmem:[#allocation8] sm:$0xff]
    %v85 = vld [vmem:[#allocation8 + $0x8] sm:$0xff]
    %v86 = vld [vmem:[#allocation8 + $0x10] sm:$0xff]
    %v87 = vld [vmem:[#allocation8 + $0x18] sm:$0xff]
    %v88 = vld [vmem:[#allocation8 + $0x20] sm:$0xff]
    %v89 = vld [vmem:[#allocation8 + $0x28] sm:$0xff]
    %v90 = vld [vmem:[#allocation8 + $0x30] sm:$0xff]
    %v91 = vld [vmem:[#allocation8 + $0x38] sm:$0xff]
    %v92 = vld [vmem:[#allocation8 + $0x40] sm:$0xff]
    %v93 = vld [vmem:[#allocation8 + $0x48] sm:$0xff]
    %v94 = vld [vmem:[#allocation8 + $0x50] sm:$0xff]
    %v95 = vld [vmem:[#allocation8 + $0x58] sm:$0xff]
    %v96 = vld [vmem:[#allocation8 + $0x60] sm:$0xff]
    %v97 = vld [vmem:[#allocation8 + $0x68] sm:$0xff]
    %v98 = vld [vmem:[#allocation8 + $0x70] sm:$0xff]
    %v99 = vld [vmem:[#allocation8 + $0x78] sm:$0xff]
    %v100 = vld [vmem:[#allocation8 + $0x80] sm:$0xff]
    %v101 = vld [vmem:[#allocation8 + $0x88] sm:$0xff]
    %v102 = vld [vmem:[#allocation8 + $0x90] sm:$0xff]
    %v103 = vld [vmem:[#allocation8 + $0x98] sm:$0xff]
    %v104 = vld [vmem:[%s4] sm:$0x3]
    %v106 = vlaneseq
    %v107 = vshrl.u32 %v106, 7
    %v108 = vsub.s32 0, %v107
    %v109 = vrot.slane %v104, %v108
    %v110 = vlaneseq
    %v111 = vshrl.u32 %v110, 7
    %v112 = vsub.s32 1, %v111
    %v113 = vrot.slane %v104, %v112
    %vm116 = vcmask 654336
    %v118 = vsel %vm116, %v83, 0
    %120 = vmatprep.subr.mxu0 %v85
    %121 = vmatpush1.msra.mxu0 %v84
    %122 = vmatprep.subr.mxu0 %v87
    %123 = vmatpush1.msra.mxu0 %v86
    %124 = vmatprep.subr.mxu0 %v89
    %125 = vmatpush1.msra.mxu0 %v88
    %126 = vmatprep.subr.mxu0 %v91
    %127 = vmatpush1.msra.mxu0 %v90
    %128 = vmatprep.subr.mxu0 %v93
    %129 = vmatpush1.msra.mxu0 %v92
    %130 = vmatprep.subr.mxu0 %v95
    %131 = vmatpush1.msra.mxu0 %v94
    %132 = vmatprep.subr.mxu0 %v97
    %133 = vmatpush1.msra.mxu0 %v96
    %134 = vmatprep.subr.mxu0 %v99
    %135 = vmatpush1.msra.mxu0 %v98
    %136 = vmatprep.subr.mxu0 %v101
    %137 = vmatpush1.msra.mxu0 %v100
    %138 = vmatprep.subr.mxu0 %v103
    %139 = vmatpush1.msra.mxu0 %v102
    %140 = vmatprep.subr.mxu0 0.0
    %141 = vmatpush1.msra.mxu0 0.0
    %142 = vmatprep.subr.mxu0 0.0
    %143 = vmatpush1.msra.mxu0 0.0
    %144 = vmatprep.subr.mxu0 0.0
    %145 = vmatpush1.msra.mxu0 0.0
    %146 = vmatprep.subr.mxu0 0.0
    %147 = vmatpush1.msra.mxu0 0.0
    %148 = vmatprep.subr.mxu0 0.0
    %149 = vmatpush1.msra.mxu0 0.0
    %150 = vmatprep.subr.mxu0 0.0
    %151 = vmatpush1.msra.mxu0 0.0
    %152 = vmatprep.subr.mxu0 0.0
    %153 = vmatpush1.msra.mxu0 0.0
    %154 = vmatprep.subr.mxu0 0.0
    %155 = vmatpush1.msra.mxu0 0.0
    %156 = vmatprep.subr.mxu0 0.0
    %157 = vmatpush1.msra.mxu0 0.0
    %158 = vmatprep.subr.mxu0 0.0
    %159 = vmatpush1.msra.mxu0 0.0
    %160 = vmatprep.subr.mxu0 0.0
    %161 = vmatpush1.msra.mxu0 0.0
    %162 = vmatprep.subr.mxu0 0.0
    %163 = vmatpush1.msra.mxu0 0.0
    %164 = vmatprep.subr.mxu0 0.0
    %165 = vmatpush1.msra.mxu0 0.0
    %166 = vmatprep.subr.mxu0 0.0
    %167 = vmatpush1.msra.mxu0 0.0
    %168 = vmatprep.subr.mxu0 0.0
    %169 = vmatpush1.msra.mxu0 0.0
    %170 = vmatprep.subr.mxu0 0.0
    %171 = vmatpush1.msra.mxu0 0.0
    %172 = vmatprep.subr.mxu0 0.0
    %173 = vmatpush1.msra.mxu0 0.0
    %174 = vmatprep.subr.mxu0 0.0
    %175 = vmatpush1.msra.mxu0 0.0
    %176 = vmatprep.subr.mxu0 0.0
    %177 = vmatpush1.msra.mxu0 0.0
    %178 = vmatprep.subr.mxu0 0.0
    %179 = vmatpush1.msra.mxu0 0.0
    %180 = vmatprep.subr.mxu0 0.0
    %181 = vmatpush1.msra.mxu0 0.0
    %182 = vmatprep.subr.mxu0 0.0
    %183 = vmatpush1.msra.mxu0 0.0
    %184 = vmatprep.mubr.f32.mxu0 0.0
    %185 = vmatmul.mubr.f32.gmra.mrb[0].mxu0 %v118
    %v186 = vpop.f32.mrb[0].mxu0
    %v187 = vadd.f32 %v109, %v186
    %v188 = vpop.f32.mrb[0].mxu0
    %v189 = vadd.f32 %v113, %v188
    %190 = vdwg.mxu0
    %v191 = vadd.f32 %v187, %v189
    %192 = vadd.xlane.f32.xlu0 %v191
    %v193 = vpop.xlane.xlu0 %192
    %v194 = vrcp.pop 256.0
    %v195 = vmul.f32 %v193, %v194
    %v196 = vmul.f32 %v187, %v187
    %v197 = vmul.f32 %v189, %v189
    %v198 = vadd.f32 %v196, %v197
    %199 = vadd.xlane.f32.xlu0 %v198
    %v200 = vpop.xlane.xlu0 %199
    %v201 = vmul.f32 %v200, %v194
    %v202 = vsub.f32 %v187, %v195
    %v203 = vsub.f32 %v189, %v195
    %v204 = vmul.f32 %v195, %v195
    %v205 = vsub.f32 %v201, %v204
    %v206 = vadd.f32 %v205, 1e-05
    %v207 = vrsqrt.pop %v206
    %v208 = vmul.f32 %v202, %v207
    %v209 = vmul.f32 %v203, %v207
    %v210 = vld [vmem:[%s5] sm:$0x3]
    %v212 = vlaneseq
    %v213 = vshrl.u32 %v212, 7
    %v214 = vsub.s32 0, %v213
    %v215 = vrot.slane %v210, %v214
    %v216 = vlaneseq
    %v217 = vshrl.u32 %v216, 7
    %v218 = vsub.s32 1, %v217
    %v219 = vrot.slane %v210, %v218
    %v222 = vmul.f32 %v208, %v215
    %v223 = vmul.f32 %v209, %v219
    %v224 = vld [vmem:[%s6] sm:$0x3]
    %v226 = vlaneseq
    %v227 = vshrl.u32 %v226, 7
    %v228 = vsub.s32 0, %v227
    %v229 = vrot.slane %v224, %v228
    %v230 = vlaneseq
    %v231 = vshrl.u32 %v230, 7
    %v232 = vsub.s32 1, %v231
    %v233 = vrot.slane %v224, %v232
    %v236 = vadd.f32 %v222, %v229
    %v237 = vadd.f32 %v223, %v233
    %v238 = vxor.u32 %v236, 2147483648
    %v239 = vxor.u32 %v237, 2147483648
    %v240 = vmul.f32 %v238, 1.442695
    %v241 = vpow.pop %v240
    %v242 = vmul.f32 %v239, 1.442695
    %v243 = vpow.pop %v242
    %v244 = vadd.f32 %v241, 1.0
    %v245 = vadd.f32 %v243, 1.0
    %v246 = vrcp.pop %v244
    %v247 = vmul.f32 1.0, %v246
    %v248 = vrcp.pop %v245
    %v249 = vmul.f32 1.0, %v248
    %v250 = vtanh.pop %v237
    %v251 = vld [vmem:[#allocation7] sm:$0xff]
    %v252 = vmul.f32 %v247, %v251
    %254 = vrot.lane.b32.xlu0 %v250, 64
    %v255 = vpop.permute.xlu0 %254
    %v257 = vmul.f32 %v247, %v255
    %259 = vrot.lane.b32.xlu0 %v257, 64
    %v260 = vpop.permute.xlu0 %259
    %v262 = vadd.f32 %v252, %v260
    %v263 = vtanh.pop %v262
    %265 = vrot.lane.b32.xlu0 %v263, 64
    %v266 = vpop.permute.xlu0 %265
    %v268 = vmul.f32 %v249, %v266
    %270 = vrot.lane.b32.xlu0 %v268, 64
    %v271 = vpop.permute.xlu0 %270
    %274 = vrot.lane.b32.xlu0 %v262, 64
    %v275 = vpop.permute.xlu0 %274
    %v277 = vsel %vm82, %v271, %v275
    %278 = vst [vmem:[#allocation10] sm:$0xff] %v277
    // Predicated region
    $region46: #{tpu_custom_call.1} parent=1 // pred_check
      _
    $region47: #{tpu_custom_call.1} parent=1 // pred_check_branch
      %280 = sbr.rel (0) target = $region49
    $region48: #{tpu_custom_call.1} parent=1 // pred_region
      %s282 = ssub.s32 128, 128
      %283 = vsyncadd [#allocation4], %s282
      %s285 = sshll.u32 [#allocation10], 4
      %s286 = int_to_ptr.vmem [resolvable:$true] %s285
      %288 = dma.vmem_to_hbm [thread:$0]  %s286, 128, %s7, [#allocation4]
    $region49: #{tpu_custom_call.1} parent=1 // pred_fallthru
      _
    // Predicated region
    $region50: #{tpu_custom_call.1} parent=1 // pred_check
      _
    $region51: #{tpu_custom_call.1} parent=1 // pred_check_branch
      %290 = sbr.rel (0) target = $region53
    $region52: #{tpu_custom_call.1} parent=1 // pred_region
      %291 = dma.done [#allocation4], 128
    $region53: #{tpu_custom_call.1} parent=1 // pred_fallthru
      _
    %292 = vsyncpa [#allocation3], 1
    %293 = vsyncpa [#allocation6], 1
    %294 = vsyncpa [#allocation9], 1
    %295 = vsyncpa [#allocation4], 1

</llo_original>
